<compile_context>
chip_gen: v6e
topology: v6e:2x2x1
jax: 0.10.0
libtpu: 0.0.40
codegen_flags: <defaults>
</compile_context>

<pallas_src>
import jax
import jax.numpy as jnp
from jax.experimental import pallas as pl
from jax.experimental.pallas import tpu as pltpu


def _net_head_kernel(sw_ref, inv_len_ref, tbl_ref, w_ref, b_ref, out_ref, acc_ref):
    # sw_ref     : (B, TV)  bf16  shared token-count tile (sum_s mask * 1{id==v})
    # inv_len_ref: (B, 1)   f32   per-row 1/length (applied in f32 after reduce)
    # tbl_ref    : (TV, H)  bf16  per-net embedding-table tile
    # w_ref      : (H, C)   bf16  per-net classification head
    # b_ref      : (1, C)   f32   per-net bias
    # out_ref    : (B, C)   f32   per-net logits
    # acc_ref    : (B, H)   f32   VMEM accumulator across vocab tiles
    k = pl.program_id(1)

    @pl.when(k == 0)
    def _():
        acc_ref[...] = jnp.zeros_like(acc_ref)

    # Fused token-gather + sum-pool for this vocab tile: one MXU matmul,
    # bf16 operands, f32 accumulation.
    acc_ref[...] += jnp.dot(sw_ref[...], tbl_ref[...],
                            preferred_element_type=jnp.float32)

    @pl.when(k == pl.num_programs(1) - 1)
    def _():
        # Mean-pool division in f32 on the VPU (free under the DMA/MXU stream).
        pooled = acc_ref[...] * inv_len_ref[...]                        # (B, H) f32
        logits = jnp.dot(pooled.astype(w_ref.dtype), w_ref[...],
                         preferred_element_type=jnp.float32) + b_ref[...]
        out_ref[...] = logits


def _pick_v_tile(vocab, hidden, itemsize=2):
    """Vocab tile sized for an ~8 MiB per-buffer table slab.

    Double-buffered (x2) plus the (B, TV) scatter tile and the (B, H) f32
    accumulator stays well under the 32 MiB scoped-VMEM default on v5e/v6e/v7x
    (and under v7x's 64 MiB physical VMEM).  Returns (tile, padded_vocab).
    """
    budget_bytes = 8 * 1024 * 1024
    tv = budget_bytes // max(1, hidden * itemsize)
    tv = max(128, (tv // 128) * 128)          # lane/sublane alignment when tiled
    if tv >= vocab:
        return vocab, vocab                   # single full block, no padding
    v_pad = ((vocab + tv - 1) // tv) * tv
    return tv, v_pad


def netgroup_forward(input_ids, attention_mask, embed_tables, w_stack, b_stack,
                     tile_v=None):
    """input_ids: [B,S] int32, attention_mask: [B,S],
    embed_tables: [N,V,H] bf16, w_stack: [N,H,C] bf16, b_stack: [N,1,C] f32.
    Returns stacked logits [N,B,C]; out[i] mirrors element i of the PyTorch
    NetGroup.forward output list.  `tile_v` optionally forces the vocab tile."""
    N, V, H = embed_tables.shape
    B, S = input_ids.shape
    C = w_stack.shape[-1]

    if tile_v is None:
        tv, v_pad = _pick_v_tile(V, H, embed_tables.dtype.itemsize)
    else:
        tv = tile_v
        v_pad = ((V + tv - 1) // tv) * tv
    n_v_tiles = v_pad // tv

    if v_pad != V:
        # TODO(synk): at real vocab sizes store the tables pre-padded (or use the
        # DMA row-gather path) instead of re-padding them here per call.
        embed_tables = jnp.pad(embed_tables, ((0, 0), (0, v_pad - V), (0, 0)))

    # One-time shared input prep (tiny, shared across all nets).  Token gather +
    # sum-pool weights are folded into a (B, V) count matrix via scatter-add
    # (~B*S writes; NO (B,S,V) one-hot).  Counts are small integers -> exact in
    # bf16.  The 1/len factor stays in f32 and is applied inside the kernel.
    mask = attention_mask.astype(jnp.float32)
    counts = jnp.zeros((B, v_pad), jnp.float32).at[
        jnp.arange(B)[:, None], input_ids].add(mask)
    scatter_w = counts.astype(jnp.bfloat16)                             # (B, Vp)
    inv_len = 1.0 / jnp.maximum(jnp.sum(mask, axis=1, keepdims=True), 1.0)  # (B,1) f32

    out = pl.pallas_call(
        _net_head_kernel,
        out_shape=jax.ShapeDtypeStruct((N, B, C), jnp.float32),
        grid_spec=pltpu.PrefetchScalarGridSpec(
            num_scalar_prefetch=0,
            grid=(N, n_v_tiles),
            in_specs=[
                # shared scatter/pool counts: tiled along V, same for every net
                pl.BlockSpec((B, tv), lambda i, k: (0, k)),
                # shared f32 1/len: same tiny block every step
                pl.BlockSpec((B, 1), lambda i, k: (0, 0)),
                # per-net embedding table, streamed one vocab tile at a time
                pl.BlockSpec((pl.Squeezed(), tv, H), lambda i, k: (i, k, 0)),
                # per-net head / bias
                pl.BlockSpec((pl.Squeezed(), H, C), lambda i, k: (i, 0, 0)),
                pl.BlockSpec((pl.Squeezed(), 1, C), lambda i, k: (i, 0, 0)),
            ],
            out_specs=pl.BlockSpec((pl.Squeezed(), B, C), lambda i, k: (i, 0, 0)),
            scratch_shapes=[pltpu.VMEM((B, H), jnp.float32)],
        ),
        compiler_params=pltpu.CompilerParams(
            # Nets independent -> shardable across TCs (v7x); vocab axis is the
            # reduction -> "arbitrary" (accumulator re-initialized at k == 0).
            dimension_semantics=("parallel", "arbitrary"),
        ),
    )(scatter_w, inv_len, embed_tables, w_stack, b_stack)

    return out  # (N, B, C)


def _reference_forward(input_ids, attention_mask, embed_tables, w_stack, b_stack):
    """Pure-JAX f32 semantic reference (masked mean pool + linear head)."""
    f32 = jnp.float32
    hi = jax.lax.Precision.HIGHEST
    mask = attention_mask.astype(f32)
    denom = jnp.maximum(jnp.sum(mask, axis=1, keepdims=True), 1.0)   # (B,1)
    emb = embed_tables.astype(f32)[:, input_ids, :]                  # (N,B,S,H)
    pooled = jnp.einsum("bs,nbsh->nbh", mask / denom, emb, precision=hi)
    logits = jnp.einsum("nbh,nhc->nbc", pooled, w_stack.astype(f32),
                        precision=hi) + b_stack.astype(f32)
    return logits                                                    # (N,B,C)


def _make_inputs(key, num_nets, n_classes, batch, seq, hidden, vocab):
    k_ids, k_emb, k_w, k_b = jax.random.split(key, 4)
    input_ids = jax.random.randint(k_ids, (batch, seq), 0, vocab, dtype=jnp.int32)
    lengths = jnp.array([seq, max(1, seq - 3)], dtype=jnp.int32)[:batch]
    attention_mask = (jnp.arange(seq)[None, :] < lengths[:, None]).astype(jnp.float32)
    embed_tables = (0.02 * jax.random.normal(
        k_emb, (num_nets, vocab, hidden), dtype=jnp.float32)).astype(jnp.bfloat16)
    w_stack = (0.05 * jax.random.normal(
        k_w, (num_nets, hidden, n_classes), dtype=jnp.float32)).astype(jnp.bfloat16)
    b_stack = 0.01 * jax.random.normal(
        k_b, (num_nets, 1, n_classes), dtype=jnp.float32)
    return input_ids, attention_mask, embed_tables, w_stack, b_stack


def _check(out, ref, num_nets, batch, n_classes):
    assert out.shape == (num_nets, batch, n_classes)
    assert not bool(jnp.any(jnp.isnan(out)))
    for i in range(num_nets):  # out[i] == element i of NetGroup.forward's list
        assert out[i].shape == (batch, n_classes)
        # bf16 parameter quantization => bf16-level tolerance vs the f32 ref.
        assert jnp.allclose(out[i], ref[i], atol=2e-3, rtol=2e-2)


if __name__ == "__main__":
    num_nets = 3      # NetGroup(num_nets=3, ...)
    n_classes = 4     # n_classes
    key = jax.random.PRNGKey(0)

    # 1) Small, forward-consistent shapes (single full vocab block).
    batch, seq, hidden, vocab = 2, 8, 32, 64
    args = _make_inputs(key, num_nets, n_classes, batch, seq, hidden, vocab)
    out = jax.block_until_ready(netgroup_forward(*args))
    ref = _reference_forward(*args)
    _check(out, ref, num_nets, batch, n_classes)

    # 2) Exercise the tiled vocab-reduction path (forced TV < V, 2 k-steps).
    vocab2 = 256
    args2 = _make_inputs(jax.random.PRNGKey(1), num_nets, n_classes,
                         batch, seq, hidden, vocab2)
    out2 = jax.block_until_ready(netgroup_forward(*args2, tile_v=128))
    ref2 = _reference_forward(*args2)
    _check(out2, ref2, num_nets, batch, n_classes)

    print("KERNEL_OK")
</pallas_src>

<mosaic_0001>
module attributes {stable_mosaic.version = 11 : i64} {
  func.func @_net_head_kernel(%arg0: i32, %arg1: i32, %arg2: memref<2x64xbf16, #tpu.memory_space<vmem>>, %arg3: memref<2x1xf32, #tpu.memory_space<vmem>>, %arg4: memref<1x64x32xbf16, #tpu.memory_space<vmem>>, %arg5: memref<1x32x4xbf16, #tpu.memory_space<vmem>>, %arg6: memref<1x1x4xf32, #tpu.memory_space<vmem>>, %arg7: memref<1x2x4xf32, #tpu.memory_space<vmem>>, %arg8: memref<2x32xf32, #tpu.memory_space<vmem>>) attributes {dimension_semantics = [#tpu.dimension_semantics<parallel>, #tpu.dimension_semantics<arbitrary>], iteration_bounds = array<i64: 3, 1>, scalar_prefetch = 0 : i64, scratch_operands = 1 : i64, tpu.core_type = #tpu.core_type<tc>, window_params = [{transform_indices = @transform_0, window_bounds = array<i64: 2, 64>}, {pipeline_mode = #tpu.pipeline_mode<synchronous>, transform_indices = @transform_1, window_bounds = array<i64: 2, 1>}, {transform_indices = @transform_2, window_bounds = array<i64: 1, 64, 32>}, {transform_indices = @transform_3, window_bounds = array<i64: 1, 32, 4>}, {transform_indices = @transform_4, window_bounds = array<i64: 1, 1, 4>}, {transform_indices = @transform_5, window_bounds = array<i64: 1, 2, 4>}]} {
    %c0_i32 = arith.constant 0 : i32
    %0 = arith.cmpi eq, %arg1, %c0_i32 : i32
    %1 = arith.extui %0 : i1 to i32
    %c0_i32_0 = arith.constant 0 : i32
    %2 = arith.cmpi ne, %1, %c0_i32_0 : i32
    scf.if %2 {
      %cst_11 = arith.constant 0.000000e+00 : f32
      %13 = vector.broadcast %cst_11 : f32 to vector<2x32xf32>
      %c0_12 = arith.constant 0 : index
      %c0_13 = arith.constant 0 : index
      %14 = vector.load %arg8[%c0_12, %c0_13] : memref<2x32xf32, #tpu.memory_space<vmem>>, vector<2x32xf32>
      tpu.vector_store %arg8[%c0_12, %c0_13], %13 {strides = array<i32>} : memref<2x32xf32, #tpu.memory_space<vmem>>, vector<2x32xf32>,
    } else {
    }
    %c0 = arith.constant 0 : index
    %c0_1 = arith.constant 0 : index
    %3 = vector.load %arg8[%c0, %c0_1] : memref<2x32xf32, #tpu.memory_space<vmem>>, vector<2x32xf32>
    %c0_2 = arith.constant 0 : index
    %c0_3 = arith.constant 0 : index
    %4 = vector.load %arg2[%c0_2, %c0_3] : memref<2x64xbf16, #tpu.memory_space<vmem>>, vector<2x64xbf16>
    %c0_4 = arith.constant 0 : index
    %c0_5 = arith.constant 0 : index
    %c0_6 = arith.constant 0 : index
    %5 = vector.load %arg4[%c0_4, %c0_5, %c0_6] : memref<1x64x32xbf16, #tpu.memory_space<vmem>>, vector<1x64x32xbf16>
    %6 = vector.shape_cast %5 : vector<1x64x32xbf16> to vector<64x32xbf16>
    %cst = arith.constant dense<0.000000e+00> : vector<2x32xf32>
    %7 = tpu.matmul %4, %6, %cst {dimension_numbers = #tpu.dot_dimension_numbers<[1], [0], [0], [1], [0, 0, 1, 1], [], []>} : vector<2x64xbf16>, vector<64x32xbf16>, vector<2x32xf32> -> vector<2x32xf32>
    %8 = arith.addf %3, %7 : vector<2x32xf32>
    %c0_7 = arith.constant 0 : index
    %c0_8 = arith.constant 0 : index
    %9 = vector.load %arg8[%c0_7, %c0_8] : memref<2x32xf32, #tpu.memory_space<vmem>>, vector<2x32xf32>
    tpu.vector_store %arg8[%c0_7, %c0_8], %8 {strides = array<i32>} : memref<2x32xf32, #tpu.memory_space<vmem>>, vector<2x32xf32>,
    %c0_i32_9 = arith.constant 0 : i32
    %10 = arith.cmpi eq, %arg1, %c0_i32_9 : i32
    %11 = arith.extui %10 : i1 to i32
    %c0_i32_10 = arith.constant 0 : i32
    %12 = arith.cmpi ne, %11, %c0_i32_10 : i32
    scf.if %12 {
      %c0_11 = arith.constant 0 : index
      %c0_12 = arith.constant 0 : index
      %13 = vector.load %arg8[%c0_11, %c0_12] : memref<2x32xf32, #tpu.memory_space<vmem>>, vector<2x32xf32>
      %c0_13 = arith.constant 0 : index
      %c0_14 = arith.constant 0 : index
      %14 = vector.load %arg3[%c0_13, %c0_14] : memref<2x1xf32, #tpu.memory_space<vmem>>, vector<2x1xf32>
      %15 = vector.broadcast %14 : vector<2x1xf32> to vector<2x32xf32>
      %16 = arith.mulf %13, %15 : vector<2x32xf32>
      %17 = arith.truncf %16 : vector<2x32xf32> to vector<2x32xbf16>
      %c0_15 = arith.constant 0 : index
      %c0_16 = arith.constant 0 : index
      %c0_17 = arith.constant 0 : index
      %18 = vector.load %arg5[%c0_15, %c0_16, %c0_17] : memref<1x32x4xbf16, #tpu.memory_space<vmem>>, vector<1x32x4xbf16>
      %19 = vector.shape_cast %18 : vector<1x32x4xbf16> to vector<32x4xbf16>
      %cst_18 = arith.constant dense<0.000000e+00> : vector<2x4xf32>
      %20 = tpu.matmul %17, %19, %cst_18 {dimension_numbers = #tpu.dot_dimension_numbers<[1], [0], [0], [1], [0, 0, 1, 1], [], []>} : vector<2x32xbf16>, vector<32x4xbf16>, vector<2x4xf32> -> vector<2x4xf32>
      %c0_19 = arith.constant 0 : index
      %c0_20 = arith.constant 0 : index
      %c0_21 = arith.constant 0 : index
      %21 = vector.load %arg6[%c0_19, %c0_20, %c0_21] : memref<1x1x4xf32, #tpu.memory_space<vmem>>, vector<1x1x4xf32>
      %22 = vector.shape_cast %21 : vector<1x1x4xf32> to vector<1x4xf32>
      %23 = vector.broadcast %22 : vector<1x4xf32> to vector<2x4xf32>
      %24 = arith.addf %20, %23 : vector<2x4xf32>
      %c0_22 = arith.constant 0 : index
      %c0_23 = arith.constant 0 : index
      %c0_24 = arith.constant 0 : index
      %25 = vector.load %arg7[%c0_22, %c0_23, %c0_24] : memref<1x2x4xf32, #tpu.memory_space<vmem>>, vector<1x2x4xf32>
      %26 = vector.shape_cast %25 : vector<1x2x4xf32> to vector<2x4xf32>
      %27 = vector.shape_cast %24 : vector<2x4xf32> to vector<1x2x4xf32>
      tpu.vector_store %arg7[%c0_22, %c0_23, %c0_24], %27 {strides = array<i32>} : memref<1x2x4xf32, #tpu.memory_space<vmem>>, vector<1x2x4xf32>,
    } else {
    }
    return
  }
  func.func @transform_0(%arg0: i32, %arg1: i32) -> (i32, i32) {
    %c0_i32 = arith.constant 0 : i32
    %c0_i32_0 = arith.constant 0 : i32
    return %c0_i32, %arg1 : i32, i32
  }
  func.func @transform_1(%arg0: i32, %arg1: i32) -> (i32, i32) {
    %c0_i32 = arith.constant 0 : i32
    %c0_i32_0 = arith.constant 0 : i32
    %c0_i32_1 = arith.constant 0 : i32
    return %c0_i32, %c0_i32_0 : i32, i32
  }
  func.func @transform_2(%arg0: i32, %arg1: i32) -> (i32, i32, i32) {
    %c0_i32 = arith.constant 0 : i32
    %c0_i32_0 = arith.constant 0 : i32
    return %arg0, %arg1, %c0_i32 : i32, i32, i32
  }
  func.func @transform_3(%arg0: i32, %arg1: i32) -> (i32, i32, i32) {
    %c0_i32 = arith.constant 0 : i32
    %c0_i32_0 = arith.constant 0 : i32
    %c0_i32_1 = arith.constant 0 : i32
    return %arg0, %c0_i32, %c0_i32_0 : i32, i32, i32
  }
  func.func @transform_4(%arg0: i32, %arg1: i32) -> (i32, i32, i32) {
    %c0_i32 = arith.constant 0 : i32
    %c0_i32_0 = arith.constant 0 : i32
    %c0_i32_1 = arith.constant 0 : i32
    return %arg0, %c0_i32, %c0_i32_0 : i32, i32, i32
  }
  func.func @transform_5(%arg0: i32, %arg1: i32) -> (i32, i32, i32) {
    %c0_i32 = arith.constant 0 : i32
    %c0_i32_0 = arith.constant 0 : i32
    %c0_i32_1 = arith.constant 0 : i32
    return %arg0, %c0_i32, %c0_i32_0 : i32, i32, i32
  }
}

</mosaic_0001>

<llo_original>
// kernel: tpu_custom_call.1
$region0: #{tpu_custom_call.1}
  #allocation0 [shape = 'u32[]', space=smem, size = 0x4, offset = 0x4, fixed_abs, tag = 'smem constant byte address 0x4 - core index']
  #allocation1 [shape = 'u32[144,128]{1,0:T(1,128)}', space=vmem, size = 0x12000, scoped, tag = 'internal scratch']
  #allocation2 [shape = 'f32[2,32]{1,0:T(2,128)}', space=vmem, size = 0x400, scoped, tag = 'scratch operand']
  %s0 = inlined_call_operand.vmem [shape: bf16[2,64], index: 0, kind: input, shape index: {}]
  %s1 = inlined_call_operand.vmem [shape: f32[2,1], index: 1, kind: input, shape index: {}]
  %s2 = inlined_call_operand.vmem [shape: bf16[3,64,32], index: 2, kind: input, shape index: {}]
  %s3 = inlined_call_operand.vmem [shape: bf16[3,32,4], index: 3, kind: input, shape index: {}]
  %s4 = inlined_call_operand.vmem [shape: f32[3,1,4], index: 4, kind: input, shape index: {}]
  %s5 = inlined_call_operand.hbm [shape: f32[3,2,4], index: 5, kind: output, shape index: {}]
  %s6 = sld [smem:[#allocation0]]
  $region61: #{tpu_custom_call.1} parent=0
    _
  %s8 = ssub.s32 1, %s6
  %s9 = scalar_select 0, %s8, %s6
  $region1: #{tpu_custom_call.1} parent=0
    #allocation3 [shape = 'u8[2048]{0}', space=vmem, size = 0x800, scoped, tag = 'output window, operand 0']
    #allocation4 [shape = 's32[2]{0}', space=sflag, size = 0x8, scoped, tag = 'scoped memory for tpu_custom_call.1']
    %10 = vsyncpa [#allocation4], 0
    %s11 = scalar_lea.sflag [#allocation4], 1
    %12 = vsyncpa %s11, 0
    loop: start=0, step=1, limit=5
    $region2: #{tpu_custom_call.1} parent=1 // loop_pre_header
      _
    $region3: #{tpu_custom_call.1} parent=1 // loop_header
      %s14 = sphi 0, %s18
      %p15 = scmp.ge.s32.totalorder %s14, 5
      %s21 = sphi 0, %s33
      %s22 = sphi 0, %s29
      %s23 = sphi 0, %s21
      %s24 = sphi 0, %s22
      %s25 = sphi 0, %s23
      %s26 = sphi 0, %s24
      %s36 = sphi 0, %s38
      %s39 = sphi 0, %s36
      %s40 = sphi 0, %s39
      %s56 = sphi 0, %s40
      %s60 = sphi 0, %s60
      %s62 = sphi 0, %s60
      %s63 = sphi 0, %s62
      %s77 = sphi 0, %s63
      %s85 = sphi 0, %s87
      %s88 = sphi 0, %s85
      %s89 = sphi 0, %s88
      %s105 = sphi 0, %s89
      %s111 = sphi 0, %s113
      %s114 = sphi 0, %s111
      %s115 = sphi 0, %s114
      %s131 = sphi 0, %s115
      %s137 = sphi 0, %s139
      %s140 = sphi 0, %s137
      %s141 = sphi 0, %s140
      %s157 = sphi 0, %s141
      %s163 = sphi 0, %s165
      %s166 = sphi 0, %s163
      %s167 = sphi 0, %s166
      %s183 = sphi 0, %s167
    $region4: #{tpu_custom_call.1} parent=1 // loop_header_branch
      %17 = sbr.rel (%p15) target = $region8
    $region5: #{tpu_custom_call.1} parent=1 // loop_body
      %s19 = ssub.s32 %s14, 1
      %s20 = ssub.s32 %s14, 2
      %s27 = sadd.s32 1, %s22
      %p28 = scmp.ge.s32.totalorder %s27, 1
      %s29 = scalar_select %p28, 0, %s27
      %s30 = sadd.s32 1, %s21
      %s31 = scalar_select %p28, %s30, %s21
      %p32 = scmp.ge.s32.totalorder %s31, 3
      %s33 = scalar_select %p32, 0, %s31
      %s34 = ssub.s32 %s22, %s29
      %p35 = scmp.eq.s32.totalorder %s34, 0
      %s37 = sadd.s32 %s36, 1
      %s38 = scalar_select %p35, %s36, %s37
      %p41 = pneg %p35
      %p42 = scmp.eq.s32.totalorder %s14, 2
      %p43 = por %p41, %p42
      %p44 = scmp.ne.s32.totalorder %s36, %s39
      %p45 = scmp.eq.s32.totalorder %s14, 0
      %p46 = por %p44, %p45
      %p47 = scmp.ne.s32.totalorder %s36, %s39
      %p48 = scmp.eq.s32.totalorder %s19, 2
      %p49 = por %p47, %p48
      %p50 = scmp.ne.s32.totalorder %s39, %s40
      %p51 = scmp.eq.s32.totalorder %s19, 0
      %p52 = por %p50, %p51
      %p53 = scmp.ne.s32.totalorder %s39, %s40
      %p54 = scmp.eq.s32.totalorder %s20, 2
      %p55 = por %p53, %p54
      %p57 = scmp.ne.s32.totalorder %s40, %s56
      %p58 = scmp.eq.s32.totalorder %s20, 0
      %p59 = por %p57, %p58
      %s61 = sadd.s32 %s60, 1
      %p64 = scmp.eq.s32.totalorder %s14, 2
      %p65 = scmp.ne.s32.totalorder %s60, %s62
      %p66 = scmp.eq.s32.totalorder %s14, 0
      %p67 = por %p65, %p66
      %p68 = scmp.ne.s32.totalorder %s60, %s62
      %p69 = scmp.eq.s32.totalorder %s19, 2
      %p70 = por %p68, %p69
      %p71 = scmp.ne.s32.totalorder %s62, %s63
      %p72 = scmp.eq.s32.totalorder %s19, 0
      %p73 = por %p71, %p72
      %p74 = scmp.ne.s32.totalorder %s62, %s63
      %p75 = scmp.eq.s32.totalorder %s20, 2
      %p76 = por %p74, %p75
      %p78 = scmp.ne.s32.totalorder %s63, %s77
      %p79 = scmp.eq.s32.totalorder %s20, 0
      %p80 = por %p78, %p79
      %s81 = ssub.s32 %s21, %s33
      %s82 = ssub.s32 %s22, %s29
      %s83 = sor.u32 %s81, %s82
      %p84 = scmp.eq.s32.totalorder %s83, 0
      %s86 = sadd.s32 %s85, 1
      %s87 = scalar_select %p84, %s85, %s86
      %p90 = pneg %p84
      %p91 = scmp.eq.s32.totalorder %s14, 2
      %p92 = por %p90, %p91
      %p93 = scmp.ne.s32.totalorder %s85, %s88
      %p94 = scmp.eq.s32.totalorder %s14, 0
      %p95 = por %p93, %p94
      %p96 = scmp.ne.s32.totalorder %s85, %s88
      %p97 = scmp.eq.s32.totalorder %s19, 2
      %p98 = por %p96, %p97
      %p99 = scmp.ne.s32.totalorder %s88, %s89
      %p100 = scmp.eq.s32.totalorder %s19, 0
      %p101 = por %p99, %p100
      %p102 = scmp.ne.s32.totalorder %s88, %s89
      %p103 = scmp.eq.s32.totalorder %s20, 2
      %p104 = por %p102, %p103
      %p106 = scmp.ne.s32.totalorder %s89, %s105
      %p107 = scmp.eq.s32.totalorder %s20, 0
      %p108 = por %p106, %p107
      %s109 = ssub.s32 %s21, %s33
      %p110 = scmp.eq.s32.totalorder %s109, 0
      %s112 = sadd.s32 %s111, 1
      %s113 = scalar_select %p110, %s111, %s112
      %p116 = pneg %p110
      %p117 = scmp.eq.s32.totalorder %s14, 2
      %p118 = por %p116, %p117
      %p119 = scmp.ne.s32.totalorder %s111, %s114
      %p120 = scmp.eq.s32.totalorder %s14, 0
      %p121 = por %p119, %p120
      %p122 = scmp.ne.s32.totalorder %s111, %s114
      %p123 = scmp.eq.s32.totalorder %s19, 2
      %p124 = por %p122, %p123
      %p125 = scmp.ne.s32.totalorder %s114, %s115
      %p126 = scmp.eq.s32.totalorder %s19, 0
      %p127 = por %p125, %p126
      %p128 = scmp.ne.s32.totalorder %s114, %s115
      %p129 = scmp.eq.s32.totalorder %s20, 2
      %p130 = por %p128, %p129
      %p132 = scmp.ne.s32.totalorder %s115, %s131
      %p133 = scmp.eq.s32.totalorder %s20, 0
      %p134 = por %p132, %p133
      %s135 = ssub.s32 %s21, %s33
      %p136 = scmp.eq.s32.totalorder %s135, 0
      %s138 = sadd.s32 %s137, 1
      %s139 = scalar_select %p136, %s137, %s138
      %p142 = pneg %p136
      %p143 = scmp.eq.s32.totalorder %s14, 2
      %p144 = por %p142, %p143
      %p145 = scmp.ne.s32.totalorder %s137, %s140
      %p146 = scmp.eq.s32.totalorder %s14, 0
      %p147 = por %p145, %p146
      %p148 = scmp.ne.s32.totalorder %s137, %s140
      %p149 = scmp.eq.s32.totalorder %s19, 2
      %p150 = por %p148, %p149
      %p151 = scmp.ne.s32.totalorder %s140, %s141
      %p152 = scmp.eq.s32.totalorder %s19, 0
      %p153 = por %p151, %p152
      %p154 = scmp.ne.s32.totalorder %s140, %s141
      %p155 = scmp.eq.s32.totalorder %s20, 2
      %p156 = por %p154, %p155
      %p158 = scmp.ne.s32.totalorder %s141, %s157
      %p159 = scmp.eq.s32.totalorder %s20, 0
      %p160 = por %p158, %p159
      %s161 = ssub.s32 %s21, %s33
      %p162 = scmp.eq.s32.totalorder %s161, 0
      %s164 = sadd.s32 %s163, 1
      %s165 = scalar_select %p162, %s163, %s164
      %p168 = pneg %p162
      %p169 = scmp.eq.s32.totalorder %s14, 2
      %p170 = por %p168, %p169
      %p171 = scmp.ne.s32.totalorder %s163, %s166
      %p172 = scmp.eq.s32.totalorder %s14, 0
      %p173 = por %p171, %p172
      %p174 = scmp.ne.s32.totalorder %s163, %s166
      %p175 = scmp.eq.s32.totalorder %s19, 2
      %p176 = por %p174, %p175
      %p177 = scmp.ne.s32.totalorder %s166, %s167
      %p178 = scmp.eq.s32.totalorder %s19, 0
      %p179 = por %p177, %p178
      %p180 = scmp.ne.s32.totalorder %s166, %s167
      %p181 = scmp.eq.s32.totalorder %s20, 2
      %p182 = por %p180, %p181
      %p184 = scmp.ne.s32.totalorder %s167, %s183
      %p185 = scmp.eq.s32.totalorder %s20, 0
      %p186 = por %p184, %p185
      %p187 = scmp.le.s32.totalorder 1, %s14
      %p188 = scmp.lt.s32.totalorder %s14, 4
      %p189 = pnand %p187, %p188
      %p190 = pneg %p189
      // Predicated region
      $region9: #{tpu_custom_call.1} parent=5 // pred_check
        _
      $region10: #{tpu_custom_call.1} parent=5 // pred_check_branch
        %192 = sbr.rel (%p189) target = $region12
      $region11: #{tpu_custom_call.1} parent=5 // pred_region
        %s193 = ssub.s32 %s14, 1
        // Predicated region
        $region13: #{tpu_custom_call.1} parent=11 // pred_check
          %p194 = pneg %p52
        $region14: #{tpu_custom_call.1} parent=11 // pred_check_branch
          %196 = sbr.rel (%p194) target = $region16
        $region15: #{tpu_custom_call.1} parent=11 // pred_region
          %p197 = scmp.lt.s32.totalorder %s24, 0
          %s198 = scalar_select %p197, %s24, 0
          %s199 = scalar_lea.vmem %s0, %s198
        $region16: #{tpu_custom_call.1} parent=11 // pred_fallthru
          _
        // Predicated region
        $region17: #{tpu_custom_call.1} parent=11 // pred_check
          %p200 = pneg %p73
        $region18: #{tpu_custom_call.1} parent=11 // pred_check_branch
          %202 = sbr.rel (%p200) target = $region20
        $region19: #{tpu_custom_call.1} parent=11 // pred_region
          _
        $region20: #{tpu_custom_call.1} parent=11 // pred_fallthru
          _
      $region12: #{tpu_custom_call.1} parent=5 // pred_fallthru
        _
      %p203 = scmp.lt.s32.totalorder %s14, 3
      // Predicated region
      $region21: #{tpu_custom_call.1} parent=5 // pred_check
        %p204 = pneg %p203
      $region22: #{tpu_custom_call.1} parent=5 // pred_check_branch
        %206 = sbr.rel (%p204) target = $region24
      $region23: #{tpu_custom_call.1} parent=5 // pred_region
        // Predicated region
        $region25: #{tpu_custom_call.1} parent=23 // pred_check
          %p207 = pneg %p95
        $region26: #{tpu_custom_call.1} parent=23 // pred_check_branch
          %209 = sbr.rel (%p207) target = $region28
        $region27: #{tpu_custom_call.1} parent=23 // pred_region
          %s210 = smul.u32 8, %s22
          %p211 = scmp.lt.s32.totalorder %s21, 2
          %s212 = scalar_select %p211, %s21, 2
          %p213 = scmp.lt.s32.totalorder %s210, 7
          %s214 = scalar_select %p213, %s210, 7
          %s215 = smul.addr %s212, 8
          %s216 = sadd.s32 %s214, %s215
          %s217 = smul.addr %s216, 4
          %s218 = scalar_lea.vmem %s2, %s217
          %s219 = smul.u32 8, %s22
        $region28: #{tpu_custom_call.1} parent=23 // pred_fallthru
          _
        // Predicated region
        $region29: #{tpu_custom_call.1} parent=23 // pred_check
          %p220 = pneg %p121
        $region30: #{tpu_custom_call.1} parent=23 // pred_check_branch
          %222 = sbr.rel (%p220) target = $region32
        $region31: #{tpu_custom_call.1} parent=23 // pred_region
          %p223 = scmp.lt.s32.totalorder %s21, 2
          %s224 = scalar_select %p223, %s21, 2
          %s225 = smul.addr %s224, 4
          %s226 = smul.addr %s225, 4
          %s227 = scalar_lea.vmem %s3, %s226
        $region32: #{tpu_custom_call.1} parent=23 // pred_fallthru
          _
        // Predicated region
        $region33: #{tpu_custom_call.1} parent=23 // pred_check
          %p228 = pneg %p147
        $region34: #{tpu_custom_call.1} parent=23 // pred_check_branch
          %230 = sbr.rel (%p228) target = $region36
        $region35: #{tpu_custom_call.1} parent=23 // pred_region
          %p231 = scmp.lt.s32.totalorder %s21, 2
          %s232 = scalar_select %p231, %s21, 2
          %s233 = scalar_lea.vmem %s4, %s232
        $region36: #{tpu_custom_call.1} parent=23 // pred_fallthru
          _
      $region24: #{tpu_custom_call.1} parent=5 // pred_fallthru
        _
      %p234 = scmp.le.s32.totalorder 1, %s14
      %p235 = scmp.lt.s32.totalorder %s14, 4
      %p236 = pnand %p234, %p235
      %p237 = pneg %p236
      // Predicated region
      $region37: #{tpu_custom_call.1} parent=5 // pred_check
        _
      $region38: #{tpu_custom_call.1} parent=5 // pred_check_branch
        %239 = sbr.rel (%p236) target = $region40
      $region39: #{tpu_custom_call.1} parent=5 // pred_region
        %s240 = ssub.s32 %s14, 1
        %p241 = scmp.lt.s32.totalorder %s24, 0
        %s242 = scalar_select %p241, %s24, 0
        %s243 = scalar_lea.vmem %s0, %s242
        %p244 = pneg %p52
        %p245 = pneg %p49
        %p246 = pneg %p73
        %p247 = pneg %p70
        %s248 = smul.u32 8, %s24
        %p249 = scmp.lt.s32.totalorder %s23, 2
        %s250 = scalar_select %p249, %s23, 2
        %p251 = scmp.lt.s32.totalorder %s248, 7
        %s252 = scalar_select %p251, %s248, 7
        %s253 = smul.addr %s250, 8
        %s254 = sadd.s32 %s252, %s253
        %s255 = smul.addr %s254, 4
        %s256 = scalar_lea.vmem %s2, %s255
        %p257 = pneg %p101
        %p258 = pneg %p98
        %p259 = scmp.lt.s32.totalorder %s23, 2
        %s260 = scalar_select %p259, %s23, 2
        %s261 = smul.addr %s260, 4
        %s262 = smul.addr %s261, 4
        %s263 = scalar_lea.vmem %s3, %s262
        %p264 = pneg %p127
        %p265 = pneg %p124
        %p266 = scmp.lt.s32.totalorder %s23, 2
        %s267 = scalar_select %p266, %s23, 2
        %s268 = scalar_lea.vmem %s4, %s267
        %p269 = pneg %p153
        %p270 = pneg %p150
        %p271 = pneg %p179
        %p272 = pneg %p176
        %s273 = sand.u32 %s166, 1
        %s274 = scalar_lea.sflag [#allocation4], %s273
        %s275 = sand.u32 %s166, 1
        %s276 = smul.addr %s275, 2
        %s277 = scalar_lea.vmem [#allocation3], %s276
        %p278 = scmp.lt.s32.totalorder %s24, 0
        %s279 = scalar_select %p278, %s24, 0
        %s280 = scalar_lea.vmem %s0, %s279
        %s281 = smul.u32 8, %s24
        %p282 = scmp.lt.s32.totalorder %s23, 2
        %s283 = scalar_select %p282, %s23, 2
        %p284 = scmp.lt.s32.totalorder %s281, 7
        %s285 = scalar_select %p284, %s281, 7
        %s286 = smul.addr %s283, 8
        %s287 = sadd.s32 %s285, %s286
        %s288 = smul.addr %s287, 4
        %s289 = scalar_lea.vmem %s2, %s288
        %s290 = smul.u32 8, %s24
        %p291 = scmp.lt.s32.totalorder %s23, 2
        %s292 = scalar_select %p291, %s23, 2
        %s293 = smul.addr %s292, 4
        %s294 = smul.addr %s293, 4
        %s295 = scalar_lea.vmem %s3, %s294
        %p296 = scmp.lt.s32.totalorder %s23, 2
        %s297 = scalar_select %p296, %s23, 2
        %s298 = scalar_lea.vmem %s4, %s297
        %p300 = scmp.eq.s32.totalorder %s24, 0
        // Predicated region
        $region41: #{tpu_custom_call.1} parent=39 // pred_check
          %p301 = pneg %p300
        $region42: #{tpu_custom_call.1} parent=39 // pred_check_branch
          %303 = sbr.rel (%p301) target = $region44
        $region43: #{tpu_custom_call.1} parent=39 // pred_region
          %vm304 = vcmask 254976
          %305 = vst.msk [vmem:[#allocation2] sm:$0x3] %vm304, 0.0
        $region44: #{tpu_custom_call.1} parent=39 // pred_fallthru
          _
        %v306 = vld [vmem:[#allocation2] sm:$0x3]
        %v307 = vld [vmem:[%s280] sm:$0x1]
        %v308 = vld [vmem:[%s289] sm:$0xf]
        %v309 = vld [vmem:[%s289 + $0x4] sm:$0xf]
        %v310 = vld [vmem:[%s289 + $0x8] sm:$0xf]
        %v311 = vld [vmem:[%s289 + $0xc] sm:$0xf]
        %v312 = vld [vmem:[%s289 + $0x10] sm:$0xf]
        %v313 = vld [vmem:[%s289 + $0x14] sm:$0xf]
        %v314 = vld [vmem:[%s289 + $0x18] sm:$0xf]
        %v315 = vld [vmem:[%s289 + $0x1c] sm:$0xf]
        %v324 = vunpack.c.l.b16 %v308
        %v325 = vunpack.c.l.b16 %v309
        %v326 = vunpack.c.l.b16 %v310
        %v327 = vunpack.c.l.b16 %v311
        %v328 = vunpack.c.l.b16 %v312
        %v329 = vunpack.c.l.b16 %v313
        %v330 = vunpack.c.l.b16 %v314
        %v331 = vunpack.c.l.b16 %v315
        %v332 = vpack.c.b16 %v325, %v324
        %v333 = vpack.c.b16 %v327, %v326
        %v334 = vpack.c.b16 %v329, %v328
        %v335 = vpack.c.b16 %v331, %v330
        %vm340 = vcmask 523264
        %v342 = vsel %vm340, %v307, 0
        %344 = vmatprep.subr.bf16.mxu0 0
        %345 = vmatpush1.bf16.msra.mxu0 0
        %346 = vmatprep.subr.bf16.mxu0 0
        %347 = vmatpush1.bf16.msra.mxu0 0
        %348 = vmatprep.subr.bf16.mxu0 0
        %349 = vmatpush1.bf16.msra.mxu0 0
        %350 = vmatprep.subr.bf16.mxu0 0
        %351 = vmatpush1.bf16.msra.mxu0 0
        %352 = vmatprep.subr.bf16.mxu0 0
        %353 = vmatpush1.bf16.msra.mxu0 %v335
        %354 = vmatprep.subr.bf16.mxu0 0
        %355 = vmatpush1.bf16.msra.mxu0 %v334
        %356 = vmatprep.subr.bf16.mxu0 0
        %357 = vmatpush1.bf16.msra.mxu0 %v333
        %358 = vmatprep.subr.bf16.mxu0 0
        %359 = vmatpush1.bf16.msra.mxu0 %v332
        %360 = vmatprep.subr.bf16.mxu0 0
        %361 = vmatpush2.bf16.msra.mxu0 0
        %362 = vmatprep.subr.bf16.mxu0 0
        %363 = vmatpush2.bf16.msra.mxu0 0
        %364 = vmatprep.subr.bf16.mxu0 0
        %365 = vmatpush2.bf16.msra.mxu0 0
        %366 = vmatprep.subr.bf16.mxu0 0
        %367 = vmatpush2.bf16.msra.mxu0 0
        %368 = vmatprep.subr.bf16.mxu0 0
        %369 = vmatpush2.bf16.msra.mxu0 0
        %370 = vmatprep.subr.bf16.mxu0 0
        %371 = vmatpush2.bf16.msra.mxu0 0
        %372 = vmatprep.subr.bf16.mxu0 0
        %373 = vmatpush2.bf16.msra.mxu0 0
        %374 = vmatprep.subr.bf16.mxu0 0
        %375 = vmatpush2.bf16.msra.mxu0 0
        %376 = vmatprep.mubr.bf16.mxu0 0
        %377 = vmatmul.mubr.bf16.gmra.mxu0 %v342
        %v378 = vpop.f32.mrf.mxu0
        %v379 = vadd.f32 0.0, %v378
        %v380 = vpop.f32.mrf.mxu0
        %v381 = vpop.f32.mrf.mxu0
        %v382 = vpop.f32.mrf.mxu0
        %383 = vdwg.mxu0
        %v384 = vadd.f32 %v306, %v379
        %vm385 = vcmask 254976
        %386 = vst.msk [vmem:[#allocation2] sm:$0x3] %vm385, %v384
        // Predicated region
        $region45: #{tpu_custom_call.1} parent=39 // pred_check
          %p387 = pneg %p300
        $region46: #{tpu_custom_call.1} parent=39 // pred_check_branch
          %389 = sbr.rel (%p387) target = $region48
        $region47: #{tpu_custom_call.1} parent=39 // pred_region
          %v390 = vld [vmem:[#allocation2] sm:$0x3]
          %v391 = vld [vmem:[%s1] sm:$0x3]
          %393 = vset.pattern.permute.xlu0 0
          %394 = vperm.xlu0 %393, %v391
          %v395 = vpop.permute.xlu0 %394
          %v397 = vmul.f32 %v390, %v395
          %v398 = vpack.c.bf16 %v397, %v397
          %v399 = vld [vmem:[%s295] sm:$0xf]
          %v400 = vld [vmem:[%s295 + $0x4] sm:$0xf]
          %v401 = vld [vmem:[%s295 + $0x8] sm:$0xf]
          %v402 = vld [vmem:[%s295 + $0xc] sm:$0xf]
          %v403 = vld [vmem:[%s298] sm:$0x1]
          %v405 = vlaneseq
          %v406 = vshrl.u32 %v405, 7
          %v407 = vsub.s32 0, %v406
          %v408 = vrot.slane %v403, %v407
          %v414 = vunpack.c.l.b16 %v399
          %v415 = vunpack.c.l.b16 %v400
          %v416 = vunpack.c.l.b16 %v401
          %v417 = vunpack.c.l.b16 %v402
          %v418 = vpack.c.b16 %v415, %v414
          %v419 = vpack.c.b16 %v417, %v416
          %vm422 = vcmask 261120
          %v424 = vsel %vm422, %v398, 0
          %426 = vmatprep.subr.bf16.mxu0 0
          %427 = vmatpush1.bf16.msra.mxu0 0
          %428 = vmatprep.subr.bf16.mxu0 0
          %429 = vmatpush1.bf16.msra.mxu0 0
          %430 = vmatprep.subr.bf16.mxu0 0
          %431 = vmatpush1.bf16.msra.mxu0 0
          %432 = vmatprep.subr.bf16.mxu0 0
          %433 = vmatpush1.bf16.msra.mxu0 0
          %434 = vmatprep.subr.bf16.mxu0 0
          %435 = vmatpush1.bf16.msra.mxu0 0
          %436 = vmatprep.subr.bf16.mxu0 0
          %437 = vmatpush1.bf16.msra.mxu0 0
          %438 = vmatprep.subr.bf16.mxu0 0
          %439 = vmatpush1.bf16.msra.mxu0 %v419
          %440 = vmatprep.subr.bf16.mxu0 0
          %441 = vmatpush1.bf16.msra.mxu0 %v418
          %442 = vmatprep.subr.bf16.mxu0 0
          %443 = vmatpush2.bf16.msra.mxu0 0
          %444 = vmatprep.subr.bf16.mxu0 0
          %445 = vmatpush2.bf16.msra.mxu0 0
          %446 = vmatprep.subr.bf16.mxu0 0
          %447 = vmatpush2.bf16.msra.mxu0 0
          %448 = vmatprep.subr.bf16.mxu0 0
          %449 = vmatpush2.bf16.msra.mxu0 0
          %450 = vmatprep.subr.bf16.mxu0 0
          %451 = vmatpush2.bf16.msra.mxu0 0
          %452 = vmatprep.subr.bf16.mxu0 0
          %453 = vmatpush2.bf16.msra.mxu0 0
          %454 = vmatprep.subr.bf16.mxu0 0
          %455 = vmatpush2.bf16.msra.mxu0 0
          %456 = vmatprep.subr.bf16.mxu0 0
          %457 = vmatpush2.bf16.msra.mxu0 0
          %458 = vmatprep.mubr.bf16.mxu0 0
          %459 = vmatmul.mubr.bf16.gmra.mxu0 %v424
          %v460 = vpop.f32.mrf.mxu0
          %v461 = vadd.f32 %v408, %v460
          %v462 = vpop.f32.mrf.mxu0
          %v463 = vpop.f32.mrf.mxu0
          %v464 = vpop.f32.mrf.mxu0
          %465 = vdwg.mxu0
          %vm466 = vcmask 25600
          %467 = vst.msk [vmem:[%s277] sm:$0x3] %vm466, %v461
        $region48: #{tpu_custom_call.1} parent=39 // pred_fallthru
          _
        %s468 = sand.u32 %s166, 1
        %s469 = scalar_lea.sflag [#allocation4], %s468
        %s470 = sand.u32 %s166, 1
        %s471 = smul.addr %s470, 2
        %s472 = scalar_lea.vmem [#allocation3], %s471
        // Predicated region
        $region49: #{tpu_custom_call.1} parent=39 // pred_check
          %p473 = pneg %p176
        $region50: #{tpu_custom_call.1} parent=39 // pred_check_branch
          %475 = sbr.rel (%p473) target = $region52
        $region51: #{tpu_custom_call.1} parent=39 // pred_region
          %s477 = ssub.s32 32, 32
          %478 = vsyncadd %s469, %s477
          %s479 = smul.addr %s23, 32
          %s480 = scalar_lea.hbm %s5, %s479
          %s482 = sshll.u32 %s472, 4
          %s483 = int_to_ptr.vmem [resolvable:$true] %s482
          %485 = dma.vmem_to_hbm [thread:$0]  %s483, 32, %s480, %s469
        $region52: #{tpu_custom_call.1} parent=39 // pred_fallthru
          _
      $region40: #{tpu_custom_call.1} parent=5 // pred_fallthru
        _
      %p486 = scmp.le.s32.totalorder 2, %s14
      // Predicated region
      $region53: #{tpu_custom_call.1} parent=5 // pred_check
        %p487 = pneg %p486
      $region54: #{tpu_custom_call.1} parent=5 // pred_check_branch
        %489 = sbr.rel (%p487) target = $region56
      $region55: #{tpu_custom_call.1} parent=5 // pred_region
        %s490 = ssub.s32 %s14, 2
        // Predicated region
        $region57: #{tpu_custom_call.1} parent=55 // pred_check
          %p491 = pneg %p182
        $region58: #{tpu_custom_call.1} parent=55 // pred_check_branch
          %493 = sbr.rel (%p491) target = $region60
        $region59: #{tpu_custom_call.1} parent=55 // pred_region
          %s494 = sand.u32 %s167, 1
          %s495 = scalar_lea.sflag [#allocation4], %s494
          %s496 = sand.u32 %s167, 1
          %s497 = smul.addr %s496, 2
          %s498 = scalar_lea.vmem [#allocation3], %s497
          %499 = dma.done %s495, 32
        $region60: #{tpu_custom_call.1} parent=55 // pred_fallthru
          _
      $region56: #{tpu_custom_call.1} parent=5 // pred_fallthru
        _
    $region6: #{tpu_custom_call.1} parent=1 // loop_footer
      %s18 = sadd.s32 1, %s14
    $region7: #{tpu_custom_call.1} parent=1 // loop_footer_branch
      %13 = sbr.rel target = $region3
    $region8: #{tpu_custom_call.1} parent=1 // loop_exit
      _
    %500 = vsyncpa [#allocation4], 1
    %s501 = scalar_lea.sflag [#allocation4], 1
    %502 = vsyncpa %s501, 1

</llo_original>
